<compile_context>
chip_gen: v5e
topology: v5e:2x2
jax: 0.10.0
libtpu: 0.0.40
codegen_flags: <defaults>
</compile_context>

<pallas_src>
import functools

import jax
import jax.numpy as jnp
from jax.experimental import pallas as pl
from jax.experimental.pallas import tpu as pltpu

_LANE = 128


# --------------------------------------------------------------------------
# Kernels
# --------------------------------------------------------------------------
def _le_kernel(a_ref, b_ref, o_ref, *, out_dtype):
    # tensor <= tensor on the whole VMEM tile (VPU, one streaming pass).
    o_ref[...] = (a_ref[...] <= b_ref[...]).astype(out_dtype)


def _le_scalar_rhs_kernel(a_ref, b_ref, o_ref, *, out_dtype):
    # tensor <= scalar; scalar lives in SMEM (exact 32-bit container) and is
    # cast back to the tensor dtype before the compare (lossless round-trip).
    o_ref[...] = (a_ref[...] <= b_ref[0, 0].astype(a_ref.dtype)).astype(out_dtype)


def _le_scalar_lhs_kernel(a_ref, b_ref, o_ref, *, out_dtype):
    # scalar <= tensor.
    o_ref[...] = (a_ref[0, 0].astype(b_ref.dtype) <= b_ref[...]).astype(out_dtype)


# --------------------------------------------------------------------------
# Helpers
# --------------------------------------------------------------------------
@functools.lru_cache(maxsize=None)
def _bool_output_supported():
    """One-time probe (cached for the whole process): can Mosaic store bool?"""
    try:
        def _k(x_ref, o_ref):
            o_ref[...] = x_ref[...] <= 0.0

        out = pl.pallas_call(
            _k, out_shape=jax.ShapeDtypeStruct((8, _LANE), jnp.bool_)
        )(jnp.zeros((8, _LANE), jnp.float32))
        jax.block_until_ready(out)
        return True
    except Exception:
        return False


@functools.lru_cache(maxsize=None)
def _block_rows_for(itemsize):
    """Rows per streaming block so each input tile is ~4 MiB (v6e/v7x) / ~2 MiB
    (v5e and older).  2 inputs x 2 buffers + bool output buffers stays well
    under the 32 MiB scoped-VMEM limit we request below."""
    try:
        kind = jax.devices()[0].device_kind.lower()
    except Exception:
        kind = ""
    target_bytes = (4 << 20) if ("v6" in kind or "v7" in kind) else (2 << 20)
    rows = target_bytes // (_LANE * int(itemsize))
    # Multiple of 512 keeps every dtype's sublane tiling (8/16/32) dense.
    return max(512, (rows // 512) * 512)


def _to_slab(x, rows_p):
    """Flatten to a lane-dense (rows_p, 128) slab, padding only when needed."""
    flat = x.reshape(-1)
    need = rows_p * _LANE
    if flat.shape[0] != need:
        flat = jnp.pad(flat, (0, need - flat.shape[0]))
    return flat.reshape(rows_p, _LANE)


# --------------------------------------------------------------------------
# Public wrapper: Pallas equivalent of `input_ <= other_` (torch.le).
# --------------------------------------------------------------------------
def less_equal(input_, other_):
    input_ = jnp.asarray(input_)
    other_ = jnp.asarray(other_)
    out_shape = jnp.broadcast_shapes(input_.shape, other_.shape)
    dt = jnp.result_type(input_.dtype, other_.dtype)

    n = 1
    for s in out_shape:
        n *= s
    if n == 0:
        return jnp.zeros(out_shape, dtype=jnp.bool_)

    a = input_.astype(dt)
    b = other_.astype(dt)

    # Choose a scalar fast path (keeps the scalar in SMEM; no HBM broadcast).
    can_scalar = jnp.issubdtype(dt, jnp.floating) or jnp.issubdtype(dt, jnp.integer)
    scalar_side = None
    if a.shape == b.shape or (a.size == 1 and b.size == 1):
        pass
    elif can_scalar and b.size == 1:
        scalar_side = "rhs"
    elif can_scalar and a.size == 1:
        scalar_side = "lhs"
    else:
        # General (non-scalar) broadcasting: rare for torch.le; materialize.
        a = jnp.broadcast_to(a, out_shape)
        b = jnp.broadcast_to(b, out_shape)

    # ---- slab geometry -------------------------------------------------------
    rows = -(-n // _LANE)
    target = _block_rows_for(jnp.dtype(dt).itemsize)
    if rows <= target:
        # Single block == full array: the (8,128) divisibility rule is waived,
        # so no row rounding (and usually no pad copy) is needed.
        block_rows = rows
        rows_p = rows
        grid = (1,)
    else:
        # Stream in big lane-dense blocks; the partial final block is handled
        # by Pallas boundary masking (no pad copy when n % 128 == 0).
        block_rows = target
        rows_p = rows
        grid = (-(-rows // block_rows),)

    # ---- operands & specs ----------------------------------------------------
    tile_spec = pl.BlockSpec((block_rows, _LANE), lambda i: (i, 0))
    smem_spec = pl.BlockSpec(memory_space=pltpu.MemorySpace.SMEM)

    if scalar_side is not None:
        # Exact-widening 32-bit container for the SMEM scalar.
        if jnp.issubdtype(dt, jnp.floating):
            smem_dt = jnp.float32
        elif jnp.issubdtype(dt, jnp.unsignedinteger):
            smem_dt = jnp.uint32
        else:
            smem_dt = jnp.int32

    if scalar_side is None:
        base_kernel = _le_kernel
        operands = (_to_slab(a, rows_p), _to_slab(b, rows_p))
        in_specs = [tile_spec, tile_spec]
    elif scalar_side == "rhs":
        base_kernel = _le_scalar_rhs_kernel
        operands = (_to_slab(a, rows_p), b.astype(smem_dt).reshape(1, 1))
        in_specs = [tile_spec, smem_spec]
    else:
        base_kernel = _le_scalar_lhs_kernel
        operands = (a.astype(smem_dt).reshape(1, 1), _to_slab(b, rows_p))
        in_specs = [smem_spec, tile_spec]

    out_dtype = jnp.bool_ if _bool_output_supported() else jnp.int8

    out2 = pl.pallas_call(
        functools.partial(base_kernel, out_dtype=out_dtype),
        out_shape=jax.ShapeDtypeStruct((rows_p, _LANE), out_dtype),
        grid_spec=pltpu.PrefetchScalarGridSpec(
            num_scalar_prefetch=0,
            grid=grid,
            in_specs=in_specs,
            out_specs=pl.BlockSpec((block_rows, _LANE), lambda i: (i, 0)),
        ),
        compiler_params=pltpu.CompilerParams(
            # "parallel" lets v7x shard the grid across its two TensorCores.
            dimension_semantics=("parallel",),
            vmem_limit_bytes=32 * 1024 * 1024,
        ),
    )(*operands)

    if out_dtype is not jnp.bool_:
        out2 = out2.astype(jnp.bool_)

    if n == rows_p * _LANE:
        return out2.reshape(out_shape)
    return out2.reshape(-1)[:n].reshape(out_shape)


# --------------------------------------------------------------------------
# Self-test
# --------------------------------------------------------------------------
if __name__ == "__main__":
    key = jax.random.PRNGKey(0)
    k1, k2 = jax.random.split(key)

    # Small NCHW-like shapes consistent with the test module's tensor pairs.
    x = jax.random.normal(k1, (2, 4, 16, 16), dtype=jnp.float32)
    y = jax.random.normal(k2, (2, 4, 16, 16), dtype=jnp.float32)

    out = less_equal(x, y)
    out = jax.block_until_ready(out)
    ref = x <= y
    assert out.dtype == jnp.bool_
    assert out.shape == ref.shape
    assert bool(jnp.all(out == ref))

    # Scalar-operand fast paths (no HBM broadcast materialization).
    s = jnp.float32(0.1)
    out_rs = jax.block_until_ready(less_equal(x, s))
    assert bool(jnp.all(out_rs == (x <= s)))
    out_ls = jax.block_until_ready(less_equal(s, y))
    assert bool(jnp.all(out_ls == (s <= y)))

    # Non-128-multiple element count exercises the pad + trim path.
    z = jax.random.normal(k1, (3, 5, 7), dtype=jnp.float32)
    w = jax.random.normal(k2, (3, 5, 7), dtype=jnp.float32)
    out_odd = jax.block_until_ready(less_equal(z, w))
    assert bool(jnp.all(out_odd == (z <= w)))

    print("KERNEL_OK")
</pallas_src>

<mosaic_0001>
module attributes {stable_mosaic.version = 11 : i64} {
  func.func @_k(%arg0: memref<8x128xf32, #tpu.memory_space<vmem>>, %arg1: memref<8x128xi32, #tpu.memory_space<vmem>>) attributes {dimension_semantics = [], scalar_prefetch = 0 : i64, scratch_operands = 0 : i64, tpu.core_type = #tpu.core_type<tc>} {
    %c0 = arith.constant 0 : index
    %c0_0 = arith.constant 0 : index
    %0 = vector.load %arg0[%c0, %c0_0] : memref<8x128xf32, #tpu.memory_space<vmem>>, vector<8x128xf32>
    %cst = arith.constant 0.000000e+00 : f32
    %1 = vector.broadcast %cst : f32 to vector<8x128xf32>
    %2 = arith.cmpf ole, %0, %1 : vector<8x128xf32>
    %c0_1 = arith.constant 0 : index
    %c0_2 = arith.constant 0 : index
    %3 = vector.load %arg1[%c0_1, %c0_2] : memref<8x128xi32, #tpu.memory_space<vmem>>, vector<8x128xi32>
    %4 = arith.extui %2 : vector<8x128xi1> to vector<8x128xi32>
    %cst_3 = arith.constant dense<0> : vector<8x128xi32>
    %5 = arith.cmpi ne, %3, %cst_3 : vector<8x128xi32>
    tpu.vector_store %arg1[%c0_1, %c0_2], %4 {strides = array<i32>} : memref<8x128xi32, #tpu.memory_space<vmem>>, vector<8x128xi32>,
    return
  }
}

module attributes {stable_mosaic.version = 11 : i64} {
  func.func @_le_kernel(%arg0: i32, %arg1: memref<16x128xf32, #tpu.memory_space<vmem>>, %arg2: memref<16x128xf32, #tpu.memory_space<vmem>>, %arg3: memref<16x128xi8, #tpu.memory_space<vmem>>) attributes {dimension_semantics = [#tpu.dimension_semantics<parallel>], iteration_bounds = array<i64: 1>, scalar_prefetch = 0 : i64, scratch_operands = 0 : i64, tpu.core_type = #tpu.core_type<tc>, window_params = [{transform_indices = @transform_0, window_bounds = array<i64: 16, 128>}, {transform_indices = @transform_1, window_bounds = array<i64: 16, 128>}, {transform_indices = @transform_2, window_bounds = array<i64: 16, 128>}]} {
    %c0 = arith.constant 0 : index
    %c0_0 = arith.constant 0 : index
    %0 = vector.load %arg1[%c0, %c0_0] : memref<16x128xf32, #tpu.memory_space<vmem>>, vector<16x128xf32>
    %c0_1 = arith.constant 0 : index
    %c0_2 = arith.constant 0 : index
    %1 = vector.load %arg2[%c0_1, %c0_2] : memref<16x128xf32, #tpu.memory_space<vmem>>, vector<16x128xf32>
    %2 = arith.cmpf ole, %0, %1 : vector<16x128xf32>
    %3 = arith.extui %2 : vector<16x128xi1> to vector<16x128xi8>
    %c0_3 = arith.constant 0 : index
    %c0_4 = arith.constant 0 : index
    %4 = vector.load %arg3[%c0_3, %c0_4] : memref<16x128xi8, #tpu.memory_space<vmem>>, vector<16x128xi8>
    tpu.vector_store %arg3[%c0_3, %c0_4], %3 {strides = array<i32>} : memref<16x128xi8, #tpu.memory_space<vmem>>, vector<16x128xi8>,
    return
  }
  func.func @transform_0(%arg0: i32) -> (i32, i32) {
    %c0_i32 = arith.constant 0 : i32
    %c0_i32_0 = arith.constant 0 : i32
    return %arg0, %c0_i32 : i32, i32
  }
  func.func @transform_1(%arg0: i32) -> (i32, i32) {
    %c0_i32 = arith.constant 0 : i32
    %c0_i32_0 = arith.constant 0 : i32
    return %arg0, %c0_i32 : i32, i32
  }
  func.func @transform_2(%arg0: i32) -> (i32, i32) {
    %c0_i32 = arith.constant 0 : i32
    %c0_i32_0 = arith.constant 0 : i32
    return %arg0, %c0_i32 : i32, i32
  }
}

</mosaic_0001>

<llo_original>
// kernel: tpu_custom_call.1
$region0: #{tpu_custom_call.1}
  #allocation0 [shape = 'u32[]', space=smem, size = 0x4, offset = 0x4, fixed_abs, tag = 'smem constant byte address 0x4 - core index']
  #allocation1 [shape = 'u32[72,128]{1,0:T(1,128)}', space=vmem, size = 0x9000, scoped, tag = 'internal scratch']
  %s0 = inlined_call_operand.hbm [shape: f32[8,128], index: 0, kind: input, shape index: {}]
  %s1 = inlined_call_operand.vmem [shape: s32[8,128], index: 1, kind: output, shape index: {}]
  %s2 = sld [smem:[#allocation0]]
  $region18: #{tpu_custom_call.1} parent=0
    _
  %s4 = ssub.s32 1, %s2
  %s5 = scalar_select 0, %s4, %s2
  $region1: #{tpu_custom_call.1} parent=0
    #allocation2 [shape = 'u8[4096]{0}', space=vmem, size = 0x1000, scoped, tag = 'input window, operand 0, single buffered']
    #allocation3 [shape = 's32[1]{0}', space=sflag, size = 0x4, scoped, tag = 'scoped memory for tpu_custom_call.1']
    %6 = vsyncpa [#allocation3], 0
    // Predicated region
    $region2: #{tpu_custom_call.1} parent=1 // pred_check
      _
    $region3: #{tpu_custom_call.1} parent=1 // pred_check_branch
      %8 = sbr.rel (0) target = $region5
    $region4: #{tpu_custom_call.1} parent=1 // pred_region
      %10 = vsyncadd [#allocation3], 0
      %s12 = sshll.u32 %s0, 4
      %s13 = int_to_ptr.hbm [resolvable:$true] %s12
      %s14 = sshll.u32 [#allocation2], 4
      %s15 = int_to_ptr.vmem [resolvable:$true] %s14
      %17 = dma.hbm_to_vmem [thread:$0]  %s13, 128, %s15, [#allocation3]
    $region5: #{tpu_custom_call.1} parent=1 // pred_fallthru
      _
    // Predicated region
    $region6: #{tpu_custom_call.1} parent=1 // pred_check
      _
    $region7: #{tpu_custom_call.1} parent=1 // pred_check_branch
      %19 = sbr.rel (0) target = $region9
    $region8: #{tpu_custom_call.1} parent=1 // pred_region
      %21 = dma.done [#allocation3], 128
    $region9: #{tpu_custom_call.1} parent=1 // pred_fallthru
      _
    %v22 = vld [vmem:[#allocation2] sm:$0xff]
    %vm23 = vcmp.le.f32.partialorder %v22, 0.0
    %v24 = vsel %vm23, 1, 0
    %25 = vst [vmem:[%s1] sm:$0xff] %v24
    // Predicated region
    $region10: #{tpu_custom_call.1} parent=1 // pred_check
      _
    $region11: #{tpu_custom_call.1} parent=1 // pred_check_branch
      %27 = sbr.rel (0) target = $region13
    $region12: #{tpu_custom_call.1} parent=1 // pred_region
      _
    $region13: #{tpu_custom_call.1} parent=1 // pred_fallthru
      _
    // Predicated region
    $region14: #{tpu_custom_call.1} parent=1 // pred_check
      _
    $region15: #{tpu_custom_call.1} parent=1 // pred_check_branch
      %29 = sbr.rel (0) target = $region17
    $region16: #{tpu_custom_call.1} parent=1 // pred_region
      _
    $region17: #{tpu_custom_call.1} parent=1 // pred_fallthru
      _
    %30 = vsyncpa [#allocation3], 1

// kernel: tpu_custom_call.1
$region0: #{tpu_custom_call.1}
  #allocation0 [shape = 'u32[]', space=smem, size = 0x4, offset = 0x4, fixed_abs, tag = 'smem constant byte address 0x4 - core index']
  #allocation1 [shape = 'u32[72,128]{1,0:T(1,128)}', space=vmem, size = 0x9000, scoped, tag = 'internal scratch']
  %s0 = inlined_call_operand.hbm [shape: f32[16,128], index: 0, kind: input, shape index: {}]
  %s1 = inlined_call_operand.hbm [shape: f32[16,128], index: 1, kind: input, shape index: {}]
  %s2 = inlined_call_operand.hbm [shape: s8[16,128], index: 2, kind: output, shape index: {}]
  %s3 = sld [smem:[#allocation0]]
  $region26: #{tpu_custom_call.1} parent=0
    _
  %s5 = ssub.s32 1, %s3
  %s6 = scalar_select 0, %s5, %s3
  $region1: #{tpu_custom_call.1} parent=0
    #allocation2 [shape = 'u8[8192]{0}', space=vmem, size = 0x2000, scoped, tag = 'input window, operand 0, single buffered']
    #allocation3 [shape = 's32[1]{0}', space=sflag, size = 0x4, scoped, tag = 'scoped memory for tpu_custom_call.1']
    #allocation4 [shape = 's32[1]{0}', space=sflag, size = 0x4, scoped, tag = 'scoped memory for tpu_custom_call.1']
    #allocation5 [shape = 'u8[8192]{0}', space=vmem, size = 0x2000, scoped, tag = 'input window, operand 1, single buffered']
    #allocation6 [shape = 's32[1]{0}', space=sflag, size = 0x4, scoped, tag = 'scoped memory for tpu_custom_call.1']
    #allocation7 [shape = 'u8[2048]{0}', space=vmem, size = 0x800, scoped, tag = 'output window, operand 0, single buffered']
    %7 = vsyncpa [#allocation3], 0
    %8 = vsyncpa [#allocation6], 0
    %9 = vsyncpa [#allocation4], 0
    // Predicated region
    $region2: #{tpu_custom_call.1} parent=1 // pred_check
      _
    $region3: #{tpu_custom_call.1} parent=1 // pred_check_branch
      %11 = sbr.rel (0) target = $region5
    $region4: #{tpu_custom_call.1} parent=1 // pred_region
      %13 = vsyncadd [#allocation3], 0
      %s14 = sshll.u32 %s0, 4
      %s15 = int_to_ptr.hbm [resolvable:$true] %s14
      %s16 = sshll.u32 [#allocation2], 4
      %s17 = int_to_ptr.vmem [resolvable:$true] %s16
      %22 = dma.hbm_to_vmem [thread:$0]  %s15, 256, %s17, [#allocation3], 128, 128, 8
    $region5: #{tpu_custom_call.1} parent=1 // pred_fallthru
      _
    // Predicated region
    $region6: #{tpu_custom_call.1} parent=1 // pred_check
      _
    $region7: #{tpu_custom_call.1} parent=1 // pred_check_branch
      %24 = sbr.rel (0) target = $region9
    $region8: #{tpu_custom_call.1} parent=1 // pred_region
      %26 = vsyncadd [#allocation6], 0
      %s27 = sshll.u32 %s1, 4
      %s28 = int_to_ptr.hbm [resolvable:$true] %s27
      %s29 = sshll.u32 [#allocation5], 4
      %s30 = int_to_ptr.vmem [resolvable:$true] %s29
      %35 = dma.hbm_to_vmem [thread:$0]  %s28, 256, %s30, [#allocation6], 128, 128, 8
    $region9: #{tpu_custom_call.1} parent=1 // pred_fallthru
      _
    // Predicated region
    $region10: #{tpu_custom_call.1} parent=1 // pred_check
      _
    $region11: #{tpu_custom_call.1} parent=1 // pred_check_branch
      %37 = sbr.rel (0) target = $region13
    $region12: #{tpu_custom_call.1} parent=1 // pred_region
      %39 = dma.done [#allocation3], 256
    $region13: #{tpu_custom_call.1} parent=1 // pred_fallthru
      _
    // Predicated region
    $region14: #{tpu_custom_call.1} parent=1 // pred_check
      _
    $region15: #{tpu_custom_call.1} parent=1 // pred_check_branch
      %41 = sbr.rel (0) target = $region17
    $region16: #{tpu_custom_call.1} parent=1 // pred_region
      %43 = dma.done [#allocation6], 256
    $region17: #{tpu_custom_call.1} parent=1 // pred_fallthru
      _
    %v46 = vld [vmem:[#allocation2] sm:$0xff]
    %v47 = vld [vmem:[#allocation2 + $0x8] sm:$0xff]
    %v48 = vld [vmem:[#allocation5] sm:$0xff]
    %v49 = vld [vmem:[#allocation5 + $0x8] sm:$0xff]
    %vm50 = vcmp.le.f32.partialorder %v46, %v48
    %vm51 = vcmp.le.f32.partialorder %v47, %v49
    %vm52 = vmpackc.low %vm51, %vm50
    %v53 = vsel %vm52, 16711935, 0
    %v54 = vsel %vm52, 16711935, 0
    %v55 = vpack.c.b8 %v54, %v53
    %vm56 = vnez %v55
    %v57 = vsel %vm56, 16843009, 0
    %v58 = vunpack.c.0.s8 %v57
    %v59 = vunpack.c.1.s8 %v57
    %v60 = vpack.c.b16 %v58, %v58
    %v61 = vpack.c.b8 %v60, %v60
    %v62 = vpack.c.b16 %v59, %v59
    %v63 = vpack.c.b8 %v62, %v62
    %64 = vst [vmem:[#allocation7] sm:$0x3] %v61
    %65 = vst [vmem:[#allocation7 + $0x2] sm:$0x3] %v63
    // Predicated region
    $region18: #{tpu_custom_call.1} parent=1 // pred_check
      _
    $region19: #{tpu_custom_call.1} parent=1 // pred_check_branch
      %67 = sbr.rel (0) target = $region21
    $region20: #{tpu_custom_call.1} parent=1 // pred_region
      %69 = vsyncadd [#allocation4], 0
      %s70 = sshll.u32 [#allocation7], 4
      %s71 = int_to_ptr.vmem [resolvable:$true] %s70
      %s72 = sshll.u32 %s2, 4
      %s73 = int_to_ptr.hbm [resolvable:$true] %s72
      %78 = dma.vmem_to_hbm [thread:$0]  %s71, 64, %s73, [#allocation4], 32, 32, 2
    $region21: #{tpu_custom_call.1} parent=1 // pred_fallthru
      _
    // Predicated region
    $region22: #{tpu_custom_call.1} parent=1 // pred_check
      _
    $region23: #{tpu_custom_call.1} parent=1 // pred_check_branch
      %80 = sbr.rel (0) target = $region25
    $region24: #{tpu_custom_call.1} parent=1 // pred_region
      %82 = dma.done [#allocation4], 64
    $region25: #{tpu_custom_call.1} parent=1 // pred_fallthru
      _
    %83 = vsyncpa [#allocation3], 1
    %84 = vsyncpa [#allocation6], 1
    %85 = vsyncpa [#allocation4], 1

</llo_original>
